<compile_context>
chip_gen: v5e
topology: v5e:2x2
jax: 0.10.0
libtpu: 0.0.40
codegen_flags: <defaults>
</compile_context>

<pallas_src>
import jax
import jax.numpy as jnp
from jax.experimental import pallas as pl
from jax.experimental.pallas import tpu as pltpu

LANE = 128
_TARGET_BLOCK_BYTES = 4 * 1024 * 1024   # ~4 MiB of payload per block
_SMALL_SLAB_BYTES = 256 * 1024          # below this a single block is fine
_MIN_GRID_STEPS = 4                     # 2 TCs (v7x) x >=2 pipelined steps each
_VMEM_CAP_BYTES = 40 * 1024 * 1024      # safe on v7x (64 MiB/TC) and v5e/v6e
_VMEM_HEADROOM = 2 * 1024 * 1024


def _round_up(a, b):
    return ((a + b - 1) // b) * b


def _exp_kernel(x_ref, o_ref):
    # Cast is a no-op for float inputs; for integer inputs the int->f32
    # promotion is fused here (VPU has huge slack in this EUP/DMA-bound
    # kernel) instead of a separate XLA convert pass over HBM.
    o_ref[...] = jnp.exp(x_ref[...].astype(o_ref.dtype))


def _exp_2d(x2d, tr, out_dtype):
    """Run the exp kernel over a (rows, cols) slab with tr-row blocks."""
    rows, cols = x2d.shape
    in_item = jnp.dtype(x2d.dtype).itemsize
    out_item = jnp.dtype(out_dtype).itemsize
    cols_vmem = _round_up(cols, LANE)
    # in + out blocks, each double-buffered by the Pallas pipeline.
    block_vmem = tr * cols_vmem * (in_item + out_item)
    vmem_limit = int(min(_VMEM_CAP_BYTES,
                         max(2 * block_vmem + _VMEM_HEADROOM, 8 * 1024 * 1024)))
    grid = (pl.cdiv(rows, tr),)
    return pl.pallas_call(
        _exp_kernel,
        out_shape=jax.ShapeDtypeStruct((rows, cols), out_dtype),
        grid_spec=pltpu.PrefetchScalarGridSpec(
            num_scalar_prefetch=0,
            grid=grid,
            in_specs=[pl.BlockSpec((tr, cols), lambda i: (i, 0))],
            out_specs=pl.BlockSpec((tr, cols), lambda i: (i, 0)),
        ),
        compiler_params=pltpu.CompilerParams(
            dimension_semantics=("parallel",),   # shards grid across TCs on v7x
            vmem_limit_bytes=vmem_limit,
        ),
        cost_estimate=pl.CostEstimate(
            flops=0,
            transcendentals=rows * cols,
            bytes_accessed=rows * cols * (in_item + out_item),
        ),
    )(x2d)


def _pick_tile_rows(rows, cols, in_item, out_item, sub, tile_rows):
    """Choose block rows; returns None if no legal tile fits the VMEM budget."""
    cols_vmem = _round_up(cols, LANE)
    row_vmem = cols_vmem * (in_item + out_item)        # per-row VMEM, in + out
    budget = _VMEM_CAP_BYTES - _VMEM_HEADROOM
    tr_vmem_max = budget // (2 * row_vmem)             # 2x for double buffering
    if tr_vmem_max < 1:
        return None

    if tile_rows is not None:
        tr = max(1, int(tile_rows))
    else:
        slab_bytes = rows * cols * max(in_item, out_item)
        if slab_bytes <= _SMALL_SLAB_BYTES:
            tr = rows                                  # tiny: single block
        else:
            # ~4 MiB blocks, but never fewer than _MIN_GRID_STEPS blocks so the
            # pipeline overlaps and both v7x TensorCores get work.
            tr_target = max(1, _TARGET_BLOCK_BYTES // (cols * out_item))
            tr_min_steps = pl.cdiv(rows, _MIN_GRID_STEPS)
            tr = max(1, min(tr_target, tr_min_steps))

    tr = min(tr, tr_vmem_max)                          # never lose double buffering
    if tr >= rows:
        return rows                                    # single full-extent block
    tr = max(sub, (tr // sub) * sub)                   # sublane-pack multiple
    if tr > tr_vmem_max:
        return None                                    # fall back to padded path
    return tr


def exp_layer(x, *, tile_rows=None):
    """Elementwise exp of an arbitrary-shaped array via a Pallas TPU kernel."""
    orig_shape = x.shape
    in_dtype = x.dtype
    # torch.exp promotes integer/bool inputs to the default float dtype.
    out_dtype = in_dtype if jnp.issubdtype(in_dtype, jnp.floating) else jnp.float32

    n = x.size
    if n == 0 or n < LANE:
        # Empty or tiny (< one lane): a kernel launch is not worth it.
        return jnp.exp(x.astype(out_dtype))

    in_item = jnp.dtype(in_dtype).itemsize
    out_item = jnp.dtype(out_dtype).itemsize
    # Sublane packing: 8 rows for 32-bit, 16 for bf16/f16, 32 for 8-bit types.
    sub = max(8, 32 // min(in_item, out_item))

    x_flat = x.reshape(-1)

    # Zero-copy (rows, cols) factorization of the flat array.
    if n % LANE == 0:
        cols = LANE                      # lane-dense fast path, unmasked stores
    else:
        # Ragged: accumulate trailing dims until >= one lane; cols divides n,
        # so the reshape is zero-copy and the last-dim block is a full extent
        # (legal BlockSpec); edge lanes are masked by Pallas. 1x HBM traffic.
        cols = 1
        for d in reversed(orig_shape):
            cols *= int(d)
            if cols >= LANE:
                break
    rows = n // cols

    tr = _pick_tile_rows(rows, cols, in_item, out_item, sub, tile_rows)
    if tr is not None:
        y = _exp_2d(x_flat.reshape(rows, cols), tr, out_dtype)
        return y.reshape(orig_shape)

    # Pathological ragged shape (a single row would blow the VMEM budget):
    # pad once to a lane multiple, run lane-dense, slice once at the end.
    pad = (-n) % LANE
    xp = jnp.pad(x_flat, (0, pad))
    rows_p = (n + pad) // LANE
    tr = _pick_tile_rows(rows_p, LANE, in_item, out_item, sub, tile_rows)
    y = _exp_2d(xp.reshape(rows_p, LANE), tr, out_dtype)
    return y.reshape(-1)[:n].reshape(orig_shape)


if __name__ == "__main__":
    key = jax.random.PRNGKey(0)

    # NCHW input, same convention as the PyTorch module's typical usage.
    x = jax.random.normal(key, (2, 4, 16, 16), dtype=jnp.float32)
    y = jax.block_until_ready(exp_layer(x))
    assert y.shape == x.shape and y.dtype == x.dtype
    assert jnp.allclose(y, jnp.exp(x), rtol=1e-6, atol=1e-6)

    # Lane-multiple but awkward row count (partial edge block masked by Pallas).
    x2 = jax.random.normal(key, (2, 4, 16, 17), dtype=jnp.float32)
    y2 = jax.block_until_ready(exp_layer(x2))
    assert y2.shape == x2.shape and y2.dtype == x2.dtype
    assert jnp.allclose(y2, jnp.exp(x2), rtol=1e-6, atol=1e-6)

    # Truly ragged numel (385 = 3*128 + 1): zero-copy trailing-dim path.
    x3 = jax.random.normal(key, (5, 7, 11), dtype=jnp.float32)
    y3 = jax.block_until_ready(exp_layer(x3))
    assert y3.shape == x3.shape and y3.dtype == x3.dtype
    assert jnp.allclose(y3, jnp.exp(x3), rtol=1e-6, atol=1e-6)

    # Larger slab: exercises the multi-step pipelined grid (>= 4 blocks).
    x4 = jax.random.normal(key, (64, 64, 64), dtype=jnp.float32)
    y4 = jax.block_until_ready(exp_layer(x4))
    assert y4.shape == x4.shape and y4.dtype == x4.dtype
    assert jnp.allclose(y4, jnp.exp(x4), rtol=1e-6, atol=1e-6)

    # bf16 path (sublane pack 16).
    x5 = jax.random.normal(key, (2, 4, 16, 16), dtype=jnp.bfloat16)
    y5 = jax.block_until_ready(exp_layer(x5))
    assert y5.shape == x5.shape and y5.dtype == x5.dtype
    assert jnp.allclose(y5.astype(jnp.float32), jnp.exp(x5).astype(jnp.float32),
                        rtol=1e-2, atol=1e-2)

    # Integer input: promotion to f32 fused into the kernel (matches torch.exp).
    x6 = jax.random.randint(key, (4, 64), -3, 4, dtype=jnp.int32)
    y6 = jax.block_until_ready(exp_layer(x6))
    assert y6.shape == x6.shape and y6.dtype == jnp.float32
    assert jnp.allclose(y6, jnp.exp(x6.astype(jnp.float32)), rtol=1e-6, atol=1e-6)

    print("KERNEL_OK")
</pallas_src>

<mosaic_0001>
module attributes {stable_mosaic.version = 11 : i64} {
  func.func @_exp_kernel(%arg0: i32, %arg1: memref<16x128xf32, #tpu.memory_space<vmem>>, %arg2: memref<16x128xf32, #tpu.memory_space<vmem>>) attributes {dimension_semantics = [#tpu.dimension_semantics<parallel>], iteration_bounds = array<i64: 1>, scalar_prefetch = 0 : i64, scratch_operands = 0 : i64, tpu.core_type = #tpu.core_type<tc>, window_params = [{transform_indices = @transform_0, window_bounds = array<i64: 16, 128>}, {transform_indices = @transform_1, window_bounds = array<i64: 16, 128>}]} {
    %c0 = arith.constant 0 : index
    %c0_0 = arith.constant 0 : index
    %0 = vector.load %arg1[%c0, %c0_0] : memref<16x128xf32, #tpu.memory_space<vmem>>, vector<16x128xf32>
    %1 = math.exp %0 : vector<16x128xf32>
    %c0_1 = arith.constant 0 : index
    %c0_2 = arith.constant 0 : index
    %2 = vector.load %arg2[%c0_1, %c0_2] : memref<16x128xf32, #tpu.memory_space<vmem>>, vector<16x128xf32>
    tpu.vector_store %arg2[%c0_1, %c0_2], %1 {strides = array<i32>} : memref<16x128xf32, #tpu.memory_space<vmem>>, vector<16x128xf32>,
    return
  }
  func.func @transform_0(%arg0: i32) -> (i32, i32) {
    %c0_i32 = arith.constant 0 : i32
    %c0_i32_0 = arith.constant 0 : i32
    return %arg0, %c0_i32 : i32, i32
  }
  func.func @transform_1(%arg0: i32) -> (i32, i32) {
    %c0_i32 = arith.constant 0 : i32
    %c0_i32_0 = arith.constant 0 : i32
    return %arg0, %c0_i32 : i32, i32
  }
}

</mosaic_0001>

<llo_original>
// kernel: tpu_custom_call.1
$region0: #{tpu_custom_call.1}
  #allocation0 [shape = 'u32[]', space=smem, size = 0x4, offset = 0x4, fixed_abs, tag = 'smem constant byte address 0x4 - core index']
  #allocation1 [shape = 'u32[72,128]{1,0:T(1,128)}', space=vmem, size = 0x9000, scoped, tag = 'internal scratch']
  %s0 = inlined_call_operand.hbm [shape: f32[16,128], index: 0, kind: input, shape index: {}]
  %s1 = inlined_call_operand.hbm [shape: f32[16,128], index: 1, kind: output, shape index: {}]
  %s2 = sld [smem:[#allocation0]]
  $region18: #{tpu_custom_call.1} parent=0
    _
  %s4 = ssub.s32 1, %s2
  %s5 = scalar_select 0, %s4, %s2
  $region1: #{tpu_custom_call.1} parent=0
    #allocation2 [shape = 'u8[8192]{0}', space=vmem, size = 0x2000, scoped, tag = 'input window, operand 0, single buffered']
    #allocation3 [shape = 's32[1]{0}', space=sflag, size = 0x4, scoped, tag = 'scoped memory for tpu_custom_call.1']
    #allocation4 [shape = 's32[1]{0}', space=sflag, size = 0x4, scoped, tag = 'scoped memory for tpu_custom_call.1']
    #allocation5 [shape = 'u8[8192]{0}', space=vmem, size = 0x2000, scoped, tag = 'output window, operand 0, single buffered']
    %6 = vsyncpa [#allocation3], 0
    %7 = vsyncpa [#allocation4], 0
    // Predicated region
    $region2: #{tpu_custom_call.1} parent=1 // pred_check
      _
    $region3: #{tpu_custom_call.1} parent=1 // pred_check_branch
      %9 = sbr.rel (0) target = $region5
    $region4: #{tpu_custom_call.1} parent=1 // pred_region
      %11 = vsyncadd [#allocation3], 0
      %s12 = sshll.u32 %s0, 4
      %s13 = int_to_ptr.hbm [resolvable:$true] %s12
      %s14 = sshll.u32 [#allocation2], 4
      %s15 = int_to_ptr.vmem [resolvable:$true] %s14
      %20 = dma.hbm_to_vmem [thread:$0]  %s13, 256, %s15, [#allocation3], 128, 128, 8
    $region5: #{tpu_custom_call.1} parent=1 // pred_fallthru
      _
    // Predicated region
    $region6: #{tpu_custom_call.1} parent=1 // pred_check
      _
    $region7: #{tpu_custom_call.1} parent=1 // pred_check_branch
      %22 = sbr.rel (0) target = $region9
    $region8: #{tpu_custom_call.1} parent=1 // pred_region
      %24 = dma.done [#allocation3], 256
    $region9: #{tpu_custom_call.1} parent=1 // pred_fallthru
      _
    %v25 = vld [vmem:[#allocation2] sm:$0xff]
    %v26 = vld [vmem:[#allocation2 + $0x8] sm:$0xff]
    %v27 = vmul.f32 %v25, 1.442695
    %v28 = vpow.pop %v27
    %v29 = vmul.f32 %v26, 1.442695
    %v30 = vpow.pop %v29
    %31 = vst [vmem:[#allocation5] sm:$0xff] %v28
    %32 = vst [vmem:[#allocation5 + $0x8] sm:$0xff] %v30
    // Predicated region
    $region10: #{tpu_custom_call.1} parent=1 // pred_check
      _
    $region11: #{tpu_custom_call.1} parent=1 // pred_check_branch
      %34 = sbr.rel (0) target = $region13
    $region12: #{tpu_custom_call.1} parent=1 // pred_region
      %36 = vsyncadd [#allocation4], 0
      %s37 = sshll.u32 [#allocation5], 4
      %s38 = int_to_ptr.vmem [resolvable:$true] %s37
      %s39 = sshll.u32 %s1, 4
      %s40 = int_to_ptr.hbm [resolvable:$true] %s39
      %45 = dma.vmem_to_hbm [thread:$0]  %s38, 256, %s40, [#allocation4], 128, 128, 8
    $region13: #{tpu_custom_call.1} parent=1 // pred_fallthru
      _
    // Predicated region
    $region14: #{tpu_custom_call.1} parent=1 // pred_check
      _
    $region15: #{tpu_custom_call.1} parent=1 // pred_check_branch
      %47 = sbr.rel (0) target = $region17
    $region16: #{tpu_custom_call.1} parent=1 // pred_region
      %49 = dma.done [#allocation4], 256
    $region17: #{tpu_custom_call.1} parent=1 // pred_fallthru
      _
    %50 = vsyncpa [#allocation3], 1
    %51 = vsyncpa [#allocation4], 1

</llo_original>
